<compile_context>
chip_gen: v5e
topology: v5e:2x2
jax: 0.10.0
libtpu: 0.0.40
codegen_flags: <defaults>
</compile_context>

<pallas_src>
import functools

import jax
import jax.numpy as jnp
from jax import lax
from jax.experimental import pallas as pl
from jax.experimental.pallas import tpu as pltpu


def _round_up(x, m):
    return (x + m - 1) // m * m


# ----------------------------- Pallas kernels ------------------------------

def _conv_stats_kernel(slab_ref, w_ref, sum_ref, sq_ref):
    """One packed conv-GEMM per row block + per-block channel statistics.

    slab_ref: (row_tile, kkc_p)  bf16  im2col rows (contraction = K*K*Cin, 0-padded)
    w_ref   : (kkc_p, cout_p)    bf16  packed conv weight
    sum_ref : (1, 1, cout_p)     f32   per-block partial channel sum
    sq_ref  : (1, 1, cout_p)     f32   per-block partial channel sum of squares
    """
    acc = jnp.dot(slab_ref[...], w_ref[...], preferred_element_type=jnp.float32)
    cout_p = acc.shape[-1]
    sum_ref[...] = jnp.sum(acc, axis=0, keepdims=True).reshape(1, 1, cout_p)
    sq_ref[...] = jnp.sum(acc * acc, axis=0, keepdims=True).reshape(1, 1, cout_p)


def _conv_bn_relu_kernel(slab_ref, w_ref, scale_ref, shift_ref, o_ref, *, cout):
    """Recompute the GEMM, apply folded BN + ReLU, store transposed & unpadded.

    o_ref: (cout, row_tile) f32 -- lane dim is the spatial axis (lane-dense),
    only the real output channels are written (no padded HBM intermediate).
    """
    acc = jnp.dot(slab_ref[...], w_ref[...], preferred_element_type=jnp.float32)
    y = jnp.maximum(acc * scale_ref[...] + shift_ref[...], 0.0)   # (row_tile, cout_p) f32
    o_ref[...] = jnp.transpose(y)[:cout, :]


# ------------------------------ wrapper -------------------------------------

def conv_block_forward(x_nchw, w_oihw, bias, gamma, beta, *, eps=1e-5):
    """ConvBlock forward.  x_nchw: (N, Cin, H, W) float32. Returns NCHW float32."""
    del bias  # per-channel conv bias is cancelled exactly by train-mode BN mean
    N, Cin, H, W = x_nchw.shape
    Cout, _, K, _ = w_oihw.shape
    pad = (K - 1) // 2
    HW = H * W
    rows = N * HW

    kkc = K * K * Cin
    kkc_p = _round_up(kkc, 128)     # MXU contraction dim (explicit zero pad -> exact)
    cout_p = _round_up(Cout, 128)   # MXU N dim / lane width inside the kernels only
    # TODO(synk): for large Cin (K*K*Cin >> 128) a per-tap shifted-GEMM path avoids
    # the K*K im2col inflation of the slab; unnecessary at these channel counts.

    # ---- glue: ONE compact bf16 im2col slab; the only HBM tensor the kernels read
    x_nhwc = jnp.transpose(x_nchw, (0, 2, 3, 1)).astype(jnp.bfloat16)
    xp = jnp.pad(x_nhwc, ((0, 0), (pad, pad), (pad, pad), (0, 0)))
    taps = [xp[:, dy:dy + H, dx:dx + W, :] for dy in range(K) for dx in range(K)]
    slab = jnp.concatenate(taps, axis=-1).reshape(rows, kkc)        # (rows, K*K*Cin)
    slab = jnp.pad(slab, ((0, 0), (0, kkc_p - kkc)))                # (rows, kkc_p) bf16

    # weight (Cout, Cin, K, K) -> (K*K*Cin, Cout), same tap-major/Cin-minor order
    w_p = jnp.transpose(w_oihw, (2, 3, 1, 0)).reshape(kkc, Cout)
    w_p = jnp.pad(w_p, ((0, kkc_p - kkc), (0, cout_p - Cout))).astype(jnp.bfloat16)

    # ---- row-block tiling: row_tile <= 512 (bounded accumulator), lane-dense out
    assert HW % 16 == 0, "H*W must be a multiple of 16"  # TODO(synk): ragged tail
    row_tile = HW
    if HW > 512:
        row_tile = 0
        for cand in (512, 384, 256, 128):
            if HW % cand == 0:
                row_tile = cand
                break
        assert row_tile, "H*W needs a multiple-of-128 divisor <= 512"  # TODO(synk)
    n_hb = HW // row_tile

    vmem_limit = 32 * 1024 * 1024  # blocks are tiny; safe on v5e/v6e/v7x

    # ---- Pallas kernel 1: packed conv GEMM -> batch-stat partials only ----------
    ch_sum, ch_sq = pl.pallas_call(
        _conv_stats_kernel,
        out_shape=(
            jax.ShapeDtypeStruct((N * n_hb, 1, cout_p), jnp.float32),
            jax.ShapeDtypeStruct((N * n_hb, 1, cout_p), jnp.float32),
        ),
        grid_spec=pltpu.PrefetchScalarGridSpec(
            num_scalar_prefetch=0,
            grid=(N, n_hb),
            in_specs=[
                pl.BlockSpec((row_tile, kkc_p), lambda n, hb: (n * n_hb + hb, 0)),
                pl.BlockSpec((kkc_p, cout_p), lambda n, hb: (0, 0)),
            ],
            out_specs=(
                pl.BlockSpec((1, 1, cout_p), lambda n, hb: (n * n_hb + hb, 0, 0)),
                pl.BlockSpec((1, 1, cout_p), lambda n, hb: (n * n_hb + hb, 0, 0)),
            ),
        ),
        compiler_params=pltpu.CompilerParams(
            dimension_semantics=("parallel", "parallel"),
            vmem_limit_bytes=vmem_limit),
    )(slab, w_p)

    # ---- tiny epilogue: fold batch stats + affine params into scale/shift -------
    s_tot = jnp.sum(ch_sum, axis=(0, 1))                  # (cout_p,)
    q_tot = jnp.sum(ch_sq, axis=(0, 1))                   # (cout_p,)
    n_elems = jnp.float32(rows)
    mean = s_tot / n_elems
    # one-pass variance (E[x^2]-mean^2) in f32; clamped against tiny cancellation
    var = jnp.maximum(q_tot / n_elems - mean * mean, 0.0)  # biased, PyTorch train-mode
    inv_std = lax.rsqrt(var + eps)
    gamma_p = jnp.pad(gamma.astype(jnp.float32), (0, cout_p - Cout))
    beta_p = jnp.pad(beta.astype(jnp.float32), (0, cout_p - Cout))
    scale = (gamma_p * inv_std).reshape(1, cout_p)
    shift = (beta_p - mean * gamma_p * inv_std).reshape(1, cout_p)

    # ---- Pallas kernel 2: recompute conv GEMM + BN + ReLU, fused final output ----
    y = pl.pallas_call(
        functools.partial(_conv_bn_relu_kernel, cout=Cout),
        out_shape=jax.ShapeDtypeStruct((N, Cout, HW), jnp.float32),
        grid_spec=pltpu.PrefetchScalarGridSpec(
            num_scalar_prefetch=0,
            grid=(N, n_hb),
            in_specs=[
                pl.BlockSpec((row_tile, kkc_p), lambda n, hb: (n * n_hb + hb, 0)),
                pl.BlockSpec((kkc_p, cout_p), lambda n, hb: (0, 0)),
                pl.BlockSpec((1, cout_p), lambda n, hb: (0, 0)),
                pl.BlockSpec((1, cout_p), lambda n, hb: (0, 0)),
            ],
            out_specs=pl.BlockSpec((None, Cout, row_tile), lambda n, hb: (n, 0, hb)),
        ),
        compiler_params=pltpu.CompilerParams(
            dimension_semantics=("parallel", "parallel"),
            vmem_limit_bytes=vmem_limit),
    )(slab, w_p, scale, shift)

    # free reshape; no slice / transpose / un-pad pass remains in XLA
    return y.reshape(N, Cout, H, W)


# ------------------------------ reference -----------------------------------

def conv_block_reference(x, w, b, gamma, beta, eps=1e-5):
    out = lax.conv_general_dilated(
        x, w, window_strides=(1, 1), padding=((1, 1), (1, 1)),
        dimension_numbers=("NCHW", "OIHW", "NCHW"),
    ) + b[None, :, None, None]
    mean = jnp.mean(out, axis=(0, 2, 3), keepdims=True)
    var = jnp.mean((out - mean) ** 2, axis=(0, 2, 3), keepdims=True)
    y = (out - mean) * lax.rsqrt(var + eps)
    y = y * gamma[None, :, None, None] + beta[None, :, None, None]
    return jnp.maximum(y, 0.0)


# ------------------------------ main -----------------------------------------

if __name__ == "__main__":
    key = jax.random.PRNGKey(0)
    k_x, k_w, k_b, k_g, k_bt = jax.random.split(key, 5)

    N, Cin, H, W = 2, 4, 16, 16
    Cout, K = 8, 3

    x = jax.random.normal(k_x, (N, Cin, H, W), dtype=jnp.float32)
    w = jax.random.normal(k_w, (Cout, Cin, K, K), dtype=jnp.float32) * 0.1
    b = jax.random.normal(k_b, (Cout,), dtype=jnp.float32) * 0.1
    gamma = 1.0 + 0.1 * jax.random.normal(k_g, (Cout,), dtype=jnp.float32)
    beta = 0.1 * jax.random.normal(k_bt, (Cout,), dtype=jnp.float32)

    fwd = jax.jit(functools.partial(conv_block_forward, eps=1e-5))
    out = jax.block_until_ready(fwd(x, w, b, gamma, beta))

    ref = conv_block_reference(x, w, b, gamma, beta)
    assert out.shape == (N, Cout, H, W)
    err = float(jnp.max(jnp.abs(out - ref)))
    assert jnp.allclose(out, ref, rtol=1e-2, atol=1e-2), err

    print("KERNEL_OK")
</pallas_src>

<mosaic_0001>
module attributes {stable_mosaic.version = 11 : i64} {
  func.func @_conv_stats_kernel(%arg0: i32, %arg1: i32, %arg2: memref<256x128xbf16, #tpu.memory_space<vmem>>, %arg3: memref<128x128xbf16, #tpu.memory_space<vmem>>, %arg4: memref<1x1x128xf32, #tpu.memory_space<vmem>>, %arg5: memref<1x1x128xf32, #tpu.memory_space<vmem>>) attributes {dimension_semantics = [#tpu.dimension_semantics<parallel>, #tpu.dimension_semantics<parallel>], iteration_bounds = array<i64: 2, 1>, scalar_prefetch = 0 : i64, scratch_operands = 0 : i64, tpu.core_type = #tpu.core_type<tc>, window_params = [{transform_indices = @transform_0, window_bounds = array<i64: 256, 128>}, {pipeline_mode = #tpu.pipeline_mode<synchronous>, transform_indices = @transform_1, window_bounds = array<i64: 128, 128>}, {transform_indices = @transform_2, window_bounds = array<i64: 1, 1, 128>}, {transform_indices = @transform_3, window_bounds = array<i64: 1, 1, 128>}]} {
    %c0 = arith.constant 0 : index
    %c0_0 = arith.constant 0 : index
    %0 = vector.load %arg2[%c0, %c0_0] : memref<256x128xbf16, #tpu.memory_space<vmem>>, vector<256x128xbf16>
    %c0_1 = arith.constant 0 : index
    %c0_2 = arith.constant 0 : index
    %1 = vector.load %arg3[%c0_1, %c0_2] : memref<128x128xbf16, #tpu.memory_space<vmem>>, vector<128x128xbf16>
    %cst = arith.constant dense<0.000000e+00> : vector<256x128xf32>
    %2 = tpu.matmul %0, %1, %cst {dimension_numbers = #tpu.dot_dimension_numbers<[1], [0], [0], [1], [0, 0, 1, 1], [], []>} : vector<256x128xbf16>, vector<128x128xbf16>, vector<256x128xf32> -> vector<256x128xf32>
    %cst_3 = arith.constant dense<0.000000e+00> : vector<128xf32>
    %3 = vector.multi_reduction <add>, %2, %cst_3 [0] : vector<256x128xf32> to vector<128xf32>
    %4 = vector.shape_cast %3 : vector<128xf32> to vector<1x128xf32>
    %5 = vector.shape_cast %4 : vector<1x128xf32> to vector<1x1x128xf32>
    %c0_4 = arith.constant 0 : index
    %c0_5 = arith.constant 0 : index
    %c0_6 = arith.constant 0 : index
    %6 = vector.load %arg4[%c0_4, %c0_5, %c0_6] : memref<1x1x128xf32, #tpu.memory_space<vmem>>, vector<1x1x128xf32>
    tpu.vector_store %arg4[%c0_4, %c0_5, %c0_6], %5 {strides = array<i32>} : memref<1x1x128xf32, #tpu.memory_space<vmem>>, vector<1x1x128xf32>,
    %7 = arith.mulf %2, %2 : vector<256x128xf32>
    %cst_7 = arith.constant dense<0.000000e+00> : vector<128xf32>
    %8 = vector.multi_reduction <add>, %7, %cst_7 [0] : vector<256x128xf32> to vector<128xf32>
    %9 = vector.shape_cast %8 : vector<128xf32> to vector<1x128xf32>
    %10 = vector.shape_cast %9 : vector<1x128xf32> to vector<1x1x128xf32>
    %c0_8 = arith.constant 0 : index
    %c0_9 = arith.constant 0 : index
    %c0_10 = arith.constant 0 : index
    %11 = vector.load %arg5[%c0_8, %c0_9, %c0_10] : memref<1x1x128xf32, #tpu.memory_space<vmem>>, vector<1x1x128xf32>
    tpu.vector_store %arg5[%c0_8, %c0_9, %c0_10], %10 {strides = array<i32>} : memref<1x1x128xf32, #tpu.memory_space<vmem>>, vector<1x1x128xf32>,
    return
  }
  func.func @transform_0(%arg0: i32, %arg1: i32) -> (i32, i32) {
    %c1_i32 = arith.constant 1 : i32
    %0 = arith.muli %arg0, %c1_i32 : i32
    %1 = arith.addi %0, %arg1 : i32
    %c0_i32 = arith.constant 0 : i32
    %c0_i32_0 = arith.constant 0 : i32
    return %1, %c0_i32 : i32, i32
  }
  func.func @transform_1(%arg0: i32, %arg1: i32) -> (i32, i32) {
    %c0_i32 = arith.constant 0 : i32
    %c0_i32_0 = arith.constant 0 : i32
    %c0_i32_1 = arith.constant 0 : i32
    return %c0_i32, %c0_i32_0 : i32, i32
  }
  func.func @transform_2(%arg0: i32, %arg1: i32) -> (i32, i32, i32) {
    %c1_i32 = arith.constant 1 : i32
    %0 = arith.muli %arg0, %c1_i32 : i32
    %1 = arith.addi %0, %arg1 : i32
    %c0_i32 = arith.constant 0 : i32
    %c0_i32_0 = arith.constant 0 : i32
    %c0_i32_1 = arith.constant 0 : i32
    return %1, %c0_i32, %c0_i32_0 : i32, i32, i32
  }
  func.func @transform_3(%arg0: i32, %arg1: i32) -> (i32, i32, i32) {
    %c1_i32 = arith.constant 1 : i32
    %0 = arith.muli %arg0, %c1_i32 : i32
    %1 = arith.addi %0, %arg1 : i32
    %c0_i32 = arith.constant 0 : i32
    %c0_i32_0 = arith.constant 0 : i32
    %c0_i32_1 = arith.constant 0 : i32
    return %1, %c0_i32, %c0_i32_0 : i32, i32, i32
  }
}

module attributes {stable_mosaic.version = 11 : i64} {
  func.func @_conv_bn_relu_kernel(%arg0: i32, %arg1: i32, %arg2: memref<256x128xbf16, #tpu.memory_space<vmem>>, %arg3: memref<128x128xbf16, #tpu.memory_space<vmem>>, %arg4: memref<1x128xf32, #tpu.memory_space<vmem>>, %arg5: memref<1x128xf32, #tpu.memory_space<vmem>>, %arg6: memref<1x8x256xf32, #tpu.memory_space<vmem>>) attributes {dimension_semantics = [#tpu.dimension_semantics<parallel>, #tpu.dimension_semantics<parallel>], iteration_bounds = array<i64: 2, 1>, scalar_prefetch = 0 : i64, scratch_operands = 0 : i64, tpu.core_type = #tpu.core_type<tc>, window_params = [{transform_indices = @transform_0, window_bounds = array<i64: 256, 128>}, {pipeline_mode = #tpu.pipeline_mode<synchronous>, transform_indices = @transform_1, window_bounds = array<i64: 128, 128>}, {pipeline_mode = #tpu.pipeline_mode<synchronous>, transform_indices = @transform_2, window_bounds = array<i64: 1, 128>}, {pipeline_mode = #tpu.pipeline_mode<synchronous>, transform_indices = @transform_3, window_bounds = array<i64: 1, 128>}, {transform_indices = @transform_4, window_bounds = array<i64: 1, 8, 256>}]} {
    %c0 = arith.constant 0 : index
    %c0_0 = arith.constant 0 : index
    %0 = vector.load %arg2[%c0, %c0_0] : memref<256x128xbf16, #tpu.memory_space<vmem>>, vector<256x128xbf16>
    %c0_1 = arith.constant 0 : index
    %c0_2 = arith.constant 0 : index
    %1 = vector.load %arg3[%c0_1, %c0_2] : memref<128x128xbf16, #tpu.memory_space<vmem>>, vector<128x128xbf16>
    %cst = arith.constant dense<0.000000e+00> : vector<256x128xf32>
    %2 = tpu.matmul %0, %1, %cst {dimension_numbers = #tpu.dot_dimension_numbers<[1], [0], [0], [1], [0, 0, 1, 1], [], []>} : vector<256x128xbf16>, vector<128x128xbf16>, vector<256x128xf32> -> vector<256x128xf32>
    %c0_3 = arith.constant 0 : index
    %c0_4 = arith.constant 0 : index
    %3 = vector.load %arg4[%c0_3, %c0_4] : memref<1x128xf32, #tpu.memory_space<vmem>>, vector<1x128xf32>
    %4 = vector.broadcast %3 : vector<1x128xf32> to vector<256x128xf32>
    %5 = arith.mulf %2, %4 : vector<256x128xf32>
    %c0_5 = arith.constant 0 : index
    %c0_6 = arith.constant 0 : index
    %6 = vector.load %arg5[%c0_5, %c0_6] : memref<1x128xf32, #tpu.memory_space<vmem>>, vector<1x128xf32>
    %7 = vector.broadcast %6 : vector<1x128xf32> to vector<256x128xf32>
    %8 = arith.addf %5, %7 : vector<256x128xf32>
    %cst_7 = arith.constant 0.000000e+00 : f32
    %9 = vector.broadcast %cst_7 : f32 to vector<256x128xf32>
    %10 = arith.maximumf %8, %9 : vector<256x128xf32>
    %11 = tpu.transpose %10, [1, 0] : vector<256x128xf32> -> vector<128x256xf32>
    %12 = vector.extract_strided_slice %11 {offsets = [0, 0], sizes = [8, 256], strides = [1, 1]} : vector<128x256xf32> to vector<8x256xf32>
    %c0_8 = arith.constant 0 : index
    %c0_9 = arith.constant 0 : index
    %c0_10 = arith.constant 0 : index
    %13 = vector.load %arg6[%c0_8, %c0_9, %c0_10] : memref<1x8x256xf32, #tpu.memory_space<vmem>>, vector<1x8x256xf32>
    %14 = vector.shape_cast %13 : vector<1x8x256xf32> to vector<8x256xf32>
    %15 = vector.shape_cast %12 : vector<8x256xf32> to vector<1x8x256xf32>
    tpu.vector_store %arg6[%c0_8, %c0_9, %c0_10], %15 {strides = array<i32>} : memref<1x8x256xf32, #tpu.memory_space<vmem>>, vector<1x8x256xf32>,
    return
  }
  func.func @transform_0(%arg0: i32, %arg1: i32) -> (i32, i32) {
    %c1_i32 = arith.constant 1 : i32
    %0 = arith.muli %arg0, %c1_i32 : i32
    %1 = arith.addi %0, %arg1 : i32
    %c0_i32 = arith.constant 0 : i32
    %c0_i32_0 = arith.constant 0 : i32
    return %1, %c0_i32 : i32, i32
  }
  func.func @transform_1(%arg0: i32, %arg1: i32) -> (i32, i32) {
    %c0_i32 = arith.constant 0 : i32
    %c0_i32_0 = arith.constant 0 : i32
    %c0_i32_1 = arith.constant 0 : i32
    return %c0_i32, %c0_i32_0 : i32, i32
  }
  func.func @transform_2(%arg0: i32, %arg1: i32) -> (i32, i32) {
    %c0_i32 = arith.constant 0 : i32
    %c0_i32_0 = arith.constant 0 : i32
    %c0_i32_1 = arith.constant 0 : i32
    return %c0_i32, %c0_i32_0 : i32, i32
  }
  func.func @transform_3(%arg0: i32, %arg1: i32) -> (i32, i32) {
    %c0_i32 = arith.constant 0 : i32
    %c0_i32_0 = arith.constant 0 : i32
    %c0_i32_1 = arith.constant 0 : i32
    return %c0_i32, %c0_i32_0 : i32, i32
  }
  func.func @transform_4(%arg0: i32, %arg1: i32) -> (i32, i32, i32) {
    %c0_i32 = arith.constant 0 : i32
    %c0_i32_0 = arith.constant 0 : i32
    return %arg0, %c0_i32, %arg1 : i32, i32, i32
  }
}

</mosaic_0001>

<llo_original>
// kernel: conv_block_forward.2
$region0: #{conv_block_forward.2}
  #allocation0 [shape = 'u32[]', space=smem, size = 0x4, offset = 0x4, fixed_abs, tag = 'smem constant byte address 0x4 - core index']
  #allocation1 [shape = 'u32[72,128]{1,0:T(1,128)}', space=vmem, size = 0x9000, scoped, tag = 'internal scratch']
  %s0 = inlined_call_operand.vmem [shape: bf16[512,128], index: 0, kind: input, shape index: {}]
  %s1 = inlined_call_operand.vmem [shape: bf16[128,128], index: 1, kind: input, shape index: {}]
  %s2 = inlined_call_operand.vmem [shape: f32[2,1,128], index: 2, kind: output, shape index: {0}]
  %s3 = inlined_call_operand.vmem [shape: f32[2,1,128], index: 3, kind: output, shape index: {1}]
  %4 = xla_tuple %s2, %s3
  %s5 = sld [smem:[#allocation0]]
  $region49: #{conv_block_forward.2} parent=0
    _
  %s7 = ssub.s32 1, %s5
  %s8 = scalar_select 0, %s7, %s5
  loop: start=0, step=1, limit=4
  $region2: #{conv_block_forward.2} parent=0 // loop_pre_header
    _
  $region3: #{conv_block_forward.2} parent=0 // loop_header
    %s10 = sphi 0, %s14
    %p11 = scmp.ge.s32.totalorder %s10, 4
    %s17 = sphi 0, %s29
    %s18 = sphi 0, %s25
    %s19 = sphi 0, %s17
    %s20 = sphi 0, %s18
    %s21 = sphi 0, %s19
    %s22 = sphi 0, %s20
    %s34 = sphi 0, %s36
    %s37 = sphi 0, %s34
    %s38 = sphi 0, %s37
    %s54 = sphi 0, %s38
    %s58 = sphi 0, %s58
    %s60 = sphi 0, %s58
    %s61 = sphi 0, %s60
    %s75 = sphi 0, %s61
    %s83 = sphi 0, %s85
    %s86 = sphi 0, %s83
    %s87 = sphi 0, %s86
    %s103 = sphi 0, %s87
    %s111 = sphi 0, %s113
    %s114 = sphi 0, %s111
    %s115 = sphi 0, %s114
    %s131 = sphi 0, %s115
  $region4: #{conv_block_forward.2} parent=0 // loop_header_branch
    %13 = sbr.rel (%p11) target = $region8
  $region5: #{conv_block_forward.2} parent=0 // loop_body
    %s15 = ssub.s32 %s10, 1
    %s16 = ssub.s32 %s10, 2
    %s23 = sadd.s32 1, %s18
    %p24 = scmp.ge.s32.totalorder %s23, 1
    %s25 = scalar_select %p24, 0, %s23
    %s26 = sadd.s32 1, %s17
    %s27 = scalar_select %p24, %s26, %s17
    %p28 = scmp.ge.s32.totalorder %s27, 2
    %s29 = scalar_select %p28, 0, %s27
    %s30 = sadd.s32 %s17, %s18
    %s31 = sadd.s32 %s29, %s25
    %s32 = ssub.s32 %s30, %s31
    %p33 = scmp.eq.s32.totalorder %s32, 0
    %s35 = sadd.s32 %s34, 1
    %s36 = scalar_select %p33, %s34, %s35
    %p39 = pneg %p33
    %p40 = scmp.eq.s32.totalorder %s10, 1
    %p41 = por %p39, %p40
    %p42 = scmp.ne.s32.totalorder %s34, %s37
    %p43 = scmp.eq.s32.totalorder %s10, 0
    %p44 = por %p42, %p43
    %p45 = scmp.ne.s32.totalorder %s34, %s37
    %p46 = scmp.eq.s32.totalorder %s15, 1
    %p47 = por %p45, %p46
    %p48 = scmp.ne.s32.totalorder %s37, %s38
    %p49 = scmp.eq.s32.totalorder %s15, 0
    %p50 = por %p48, %p49
    %p51 = scmp.ne.s32.totalorder %s37, %s38
    %p52 = scmp.eq.s32.totalorder %s16, 1
    %p53 = por %p51, %p52
    %p55 = scmp.ne.s32.totalorder %s38, %s54
    %p56 = scmp.eq.s32.totalorder %s16, 0
    %p57 = por %p55, %p56
    %s59 = sadd.s32 %s58, 1
    %p62 = scmp.eq.s32.totalorder %s10, 1
    %p63 = scmp.ne.s32.totalorder %s58, %s60
    %p64 = scmp.eq.s32.totalorder %s10, 0
    %p65 = por %p63, %p64
    %p66 = scmp.ne.s32.totalorder %s58, %s60
    %p67 = scmp.eq.s32.totalorder %s15, 1
    %p68 = por %p66, %p67
    %p69 = scmp.ne.s32.totalorder %s60, %s61
    %p70 = scmp.eq.s32.totalorder %s15, 0
    %p71 = por %p69, %p70
    %p72 = scmp.ne.s32.totalorder %s60, %s61
    %p73 = scmp.eq.s32.totalorder %s16, 1
    %p74 = por %p72, %p73
    %p76 = scmp.ne.s32.totalorder %s61, %s75
    %p77 = scmp.eq.s32.totalorder %s16, 0
    %p78 = por %p76, %p77
    %s79 = sadd.s32 %s17, %s18
    %s80 = sadd.s32 %s29, %s25
    %s81 = ssub.s32 %s79, %s80
    %p82 = scmp.eq.s32.totalorder %s81, 0
    %s84 = sadd.s32 %s83, 1
    %s85 = scalar_select %p82, %s83, %s84
    %p88 = pneg %p82
    %p89 = scmp.eq.s32.totalorder %s10, 1
    %p90 = por %p88, %p89
    %p91 = scmp.ne.s32.totalorder %s83, %s86
    %p92 = scmp.eq.s32.totalorder %s10, 0
    %p93 = por %p91, %p92
    %p94 = scmp.ne.s32.totalorder %s83, %s86
    %p95 = scmp.eq.s32.totalorder %s15, 1
    %p96 = por %p94, %p95
    %p97 = scmp.ne.s32.totalorder %s86, %s87
    %p98 = scmp.eq.s32.totalorder %s15, 0
    %p99 = por %p97, %p98
    %p100 = scmp.ne.s32.totalorder %s86, %s87
    %p101 = scmp.eq.s32.totalorder %s16, 1
    %p102 = por %p100, %p101
    %p104 = scmp.ne.s32.totalorder %s87, %s103
    %p105 = scmp.eq.s32.totalorder %s16, 0
    %p106 = por %p104, %p105
    %s107 = sadd.s32 %s17, %s18
    %s108 = sadd.s32 %s29, %s25
    %s109 = ssub.s32 %s107, %s108
    %p110 = scmp.eq.s32.totalorder %s109, 0
    %s112 = sadd.s32 %s111, 1
    %s113 = scalar_select %p110, %s111, %s112
    %p116 = pneg %p110
    %p117 = scmp.eq.s32.totalorder %s10, 1
    %p118 = por %p116, %p117
    %p119 = scmp.ne.s32.totalorder %s111, %s114
    %p120 = scmp.eq.s32.totalorder %s10, 0
    %p121 = por %p119, %p120
    %p122 = scmp.ne.s32.totalorder %s111, %s114
    %p123 = scmp.eq.s32.totalorder %s15, 1
    %p124 = por %p122, %p123
    %p125 = scmp.ne.s32.totalorder %s114, %s115
    %p126 = scmp.eq.s32.totalorder %s15, 0
    %p127 = por %p125, %p126
    %p128 = scmp.ne.s32.totalorder %s114, %s115
    %p129 = scmp.eq.s32.totalorder %s16, 1
    %p130 = por %p128, %p129
    %p132 = scmp.ne.s32.totalorder %s115, %s131
    %p133 = scmp.eq.s32.totalorder %s16, 0
    %p134 = por %p132, %p133
    %p135 = scmp.le.s32.totalorder 1, %s10
    %p136 = scmp.lt.s32.totalorder %s10, 3
    %p137 = pnand %p135, %p136
    %p138 = pneg %p137
    // Predicated region
    $region9: #{conv_block_forward.2} parent=5 // pred_check
      _
    $region10: #{conv_block_forward.2} parent=5 // pred_check_branch
      %140 = sbr.rel (%p137) target = $region12
    $region11: #{conv_block_forward.2} parent=5 // pred_region
      %s141 = ssub.s32 %s10, 1
      // Predicated region
      $region13: #{conv_block_forward.2} parent=11 // pred_check
        %p142 = pneg %p71
      $region14: #{conv_block_forward.2} parent=11 // pred_check_branch
        %144 = sbr.rel (%p142) target = $region16
      $region15: #{conv_block_forward.2} parent=11 // pred_region
        _
      $region16: #{conv_block_forward.2} parent=11 // pred_fallthru
        _
    $region12: #{conv_block_forward.2} parent=5 // pred_fallthru
      _
    %p145 = scmp.lt.s32.totalorder %s10, 2
    // Predicated region
    $region17: #{conv_block_forward.2} parent=5 // pred_check
      %p146 = pneg %p145
    $region18: #{conv_block_forward.2} parent=5 // pred_check_branch
      %148 = sbr.rel (%p146) target = $region20
    $region19: #{conv_block_forward.2} parent=5 // pred_region
      // Predicated region
      $region21: #{conv_block_forward.2} parent=19 // pred_check
        %p149 = pneg %p44
      $region22: #{conv_block_forward.2} parent=19 // pred_check_branch
        %151 = sbr.rel (%p149) target = $region24
      $region23: #{conv_block_forward.2} parent=19 // pred_region
        %s152 = sadd.s32 %s17, %s18
        %s153 = smul.u32 32, %s152
        %p154 = scmp.lt.s32.totalorder %s153, 63
        %s155 = scalar_select %p154, %s153, 63
        %s156 = smul.addr %s155, 4
        %s157 = scalar_lea.vmem %s0, %s156
        %s158 = sadd.s32 %s17, %s18
        %s159 = smul.u32 32, %s158
      $region24: #{conv_block_forward.2} parent=19 // pred_fallthru
        _
    $region20: #{conv_block_forward.2} parent=5 // pred_fallthru
      _
    %p160 = scmp.le.s32.totalorder 1, %s10
    %p161 = scmp.lt.s32.totalorder %s10, 3
    %p162 = pnand %p160, %p161
    %p163 = pneg %p162
    // Predicated region
    $region25: #{conv_block_forward.2} parent=5 // pred_check
      _
    $region26: #{conv_block_forward.2} parent=5 // pred_check_branch
      %165 = sbr.rel (%p162) target = $region28
    $region27: #{conv_block_forward.2} parent=5 // pred_region
      %s166 = ssub.s32 %s10, 1
      %s167 = sadd.s32 %s19, %s20
      %s168 = smul.u32 32, %s167
      %p169 = scmp.lt.s32.totalorder %s168, 63
      %s170 = scalar_select %p169, %s168, 63
      %s171 = smul.addr %s170, 4
      %s172 = scalar_lea.vmem %s0, %s171
      %p173 = pneg %p50
      %p174 = pneg %p47
      %p175 = pneg %p71
      %p176 = pneg %p68
      %p177 = pneg %p99
      %p178 = pneg %p96
      %s179 = sadd.s32 %s19, %s20
      %p180 = scmp.lt.s32.totalorder %s179, 1
      %s181 = scalar_select %p180, %s179, 1
      %s182 = scalar_lea.vmem %s2, %s181
      %p183 = pneg %p127
      %p184 = pneg %p124
      %s185 = sadd.s32 %s19, %s20
      %p186 = scmp.lt.s32.totalorder %s185, 1
      %s187 = scalar_select %p186, %s185, 1
      %s188 = scalar_lea.vmem %s3, %s187
      %s189 = sadd.s32 %s19, %s20
      %s190 = smul.u32 32, %s189
      %p191 = scmp.lt.s32.totalorder %s190, 63
      %s192 = scalar_select %p191, %s190, 63
      %s193 = smul.addr %s192, 4
      %s194 = scalar_lea.vmem %s0, %s193
      %s195 = sadd.s32 %s19, %s20
      %s196 = smul.u32 32, %s195
      %s197 = sadd.s32 %s19, %s20
      %p198 = scmp.lt.s32.totalorder %s197, 1
      %s199 = scalar_select %p198, %s197, 1
      %s200 = scalar_lea.vmem %s2, %s199
      %s201 = sadd.s32 %s19, %s20
      %s202 = sadd.s32 %s19, %s20
      %p203 = scmp.lt.s32.totalorder %s202, 1
      %s204 = scalar_select %p203, %s202, 1
      %s205 = scalar_lea.vmem %s3, %s204
      %s206 = sadd.s32 %s19, %s20
      %v207 = vld [vmem:[%s194] sm:$0xf]
      %v208 = vld [vmem:[%s194 + $0x4] sm:$0xf]
      %v209 = vld [vmem:[%s194 + $0x8] sm:$0xf]
      %v210 = vld [vmem:[%s194 + $0xc] sm:$0xf]
      %v211 = vld [vmem:[%s194 + $0x10] sm:$0xf]
      %v212 = vld [vmem:[%s194 + $0x14] sm:$0xf]
      %v213 = vld [vmem:[%s194 + $0x18] sm:$0xf]
      %v214 = vld [vmem:[%s194 + $0x1c] sm:$0xf]
      %v215 = vld [vmem:[%s194 + $0x20] sm:$0xf]
      %v216 = vld [vmem:[%s194 + $0x24] sm:$0xf]
      %v217 = vld [vmem:[%s194 + $0x28] sm:$0xf]
      %v218 = vld [vmem:[%s194 + $0x2c] sm:$0xf]
      %v219 = vld [vmem:[%s194 + $0x30] sm:$0xf]
      %v220 = vld [vmem:[%s194 + $0x34] sm:$0xf]
      %v221 = vld [vmem:[%s194 + $0x38] sm:$0xf]
      %v222 = vld [vmem:[%s194 + $0x3c] sm:$0xf]
      %v223 = vld [vmem:[%s194 + $0x40] sm:$0xf]
      %v224 = vld [vmem:[%s194 + $0x44] sm:$0xf]
      %v225 = vld [vmem:[%s194 + $0x48] sm:$0xf]
      %v226 = vld [vmem:[%s194 + $0x4c] sm:$0xf]
      %v227 = vld [vmem:[%s194 + $0x50] sm:$0xf]
      %v228 = vld [vmem:[%s194 + $0x54] sm:$0xf]
      %v229 = vld [vmem:[%s194 + $0x58] sm:$0xf]
      %v230 = vld [vmem:[%s194 + $0x5c] sm:$0xf]
      %v231 = vld [vmem:[%s194 + $0x60] sm:$0xf]
      %v232 = vld [vmem:[%s194 + $0x64] sm:$0xf]
      %v233 = vld [vmem:[%s194 + $0x68] sm:$0xf]
      %v234 = vld [vmem:[%s194 + $0x6c] sm:$0xf]
      %v235 = vld [vmem:[%s194 + $0x70] sm:$0xf]
      %v236 = vld [vmem:[%s194 + $0x74] sm:$0xf]
      %v237 = vld [vmem:[%s194 + $0x78] sm:$0xf]
      %v238 = vld [vmem:[%s194 + $0x7c] sm:$0xf]
      %v239 = vld [vmem:[%s1] sm:$0xf]
      %v240 = vld [vmem:[%s1 + $0x4] sm:$0xf]
      %v241 = vld [vmem:[%s1 + $0x8] sm:$0xf]
      %v242 = vld [vmem:[%s1 + $0xc] sm:$0xf]
      %v243 = vld [vmem:[%s1 + $0x10] sm:$0xf]
      %v244 = vld [vmem:[%s1 + $0x14] sm:$0xf]
      %v245 = vld [vmem:[%s1 + $0x18] sm:$0xf]
      %v246 = vld [vmem:[%s1 + $0x1c] sm:$0xf]
      %v247 = vld [vmem:[%s1 + $0x20] sm:$0xf]
      %v248 = vld [vmem:[%s1 + $0x24] sm:$0xf]
      %v249 = vld [vmem:[%s1 + $0x28] sm:$0xf]
      %v250 = vld [vmem:[%s1 + $0x2c] sm:$0xf]
      %v251 = vld [vmem:[%s1 + $0x30] sm:$0xf]
      %v252 = vld [vmem:[%s1 + $0x34] sm:$0xf]
      %v253 = vld [vmem:[%s1 + $0x38] sm:$0xf]
      %v254 = vld [vmem:[%s1 + $0x3c] sm:$0xf]
      %v287 = vunpack.c.l.b16 %v207
      %v288 = vunpack.c.l.b16 %v208
      %v289 = vunpack.c.l.b16 %v209
      %v290 = vunpack.c.l.b16 %v210
      %v291 = vunpack.c.l.b16 %v211
      %v292 = vunpack.c.l.b16 %v212
      %v293 = vunpack.c.l.b16 %v213
      %v294 = vunpack.c.l.b16 %v214
      %v295 = vunpack.c.l.b16 %v215
      %v296 = vunpack.c.l.b16 %v216
      %v297 = vunpack.c.l.b16 %v217
      %v298 = vunpack.c.l.b16 %v218
      %v299 = vunpack.c.l.b16 %v219
      %v300 = vunpack.c.l.b16 %v220
      %v301 = vunpack.c.l.b16 %v221
      %v302 = vunpack.c.l.b16 %v222
      %v303 = vunpack.c.l.b16 %v223
      %v304 = vunpack.c.l.b16 %v224
      %v305 = vunpack.c.l.b16 %v225
      %v306 = vunpack.c.l.b16 %v226
      %v307 = vunpack.c.l.b16 %v227
      %v308 = vunpack.c.l.b16 %v228
      %v309 = vunpack.c.l.b16 %v229
      %v310 = vunpack.c.l.b16 %v230
      %v311 = vunpack.c.l.b16 %v231
      %v312 = vunpack.c.l.b16 %v232
      %v313 = vunpack.c.l.b16 %v233
      %v314 = vunpack.c.l.b16 %v234
      %v315 = vunpack.c.l.b16 %v235
      %v316 = vunpack.c.l.b16 %v236
      %v317 = vunpack.c.l.b16 %v237
      %v318 = vunpack.c.l.b16 %v238
      %v319 = vpack.c.b16 %v288, %v287
      %v320 = vpack.c.b16 %v290, %v289
      %v321 = vpack.c.b16 %v292, %v291
      %v322 = vpack.c.b16 %v294, %v293
      %v323 = vpack.c.b16 %v296, %v295
      %v324 = vpack.c.b16 %v298, %v297
      %v325 = vpack.c.b16 %v300, %v299
      %v326 = vpack.c.b16 %v302, %v301
      %v327 = vpack.c.b16 %v304, %v303
      %v328 = vpack.c.b16 %v306, %v305
      %v329 = vpack.c.b16 %v308, %v307
      %v330 = vpack.c.b16 %v310, %v309
      %v331 = vpack.c.b16 %v312, %v311
      %v332 = vpack.c.b16 %v314, %v313
      %v333 = vpack.c.b16 %v316, %v315
      %v334 = vpack.c.b16 %v318, %v317
      %v367 = vunpack.c.l.b16 %v239
      %v368 = vunpack.c.l.b16 %v240
      %v369 = vunpack.c.l.b16 %v241
      %v370 = vunpack.c.l.b16 %v242
      %v371 = vunpack.c.l.b16 %v243
      %v372 = vunpack.c.l.b16 %v244
      %v373 = vunpack.c.l.b16 %v245
      %v374 = vunpack.c.l.b16 %v246
      %v375 = vunpack.c.l.b16 %v247
      %v376 = vunpack.c.l.b16 %v248
      %v377 = vunpack.c.l.b16 %v249
      %v378 = vunpack.c.l.b16 %v250
      %v379 = vunpack.c.l.b16 %v251
      %v380 = vunpack.c.l.b16 %v252
      %v381 = vunpack.c.l.b16 %v253
      %v382 = vunpack.c.l.b16 %v254
      %v383 = vpack.c.b16 %v368, %v367
      %v384 = vpack.c.b16 %v370, %v369
      %v385 = vpack.c.b16 %v372, %v371
      %v386 = vpack.c.b16 %v374, %v373
      %v387 = vpack.c.b16 %v376, %v375
      %v388 = vpack.c.b16 %v378, %v377
      %v389 = vpack.c.b16 %v380, %v379
      %v390 = vpack.c.b16 %v382, %v381
      %399 = vmatpush.bf16.msra.mxu0 %v390
      %400 = vmatpush.bf16.msra.mxu0 %v389
      %401 = vmatpush.bf16.msra.mxu0 %v388
      %402 = vmatpush.bf16.msra.mxu0 %v387
      %403 = vmatpush.bf16.msra.mxu0 %v386
      %404 = vmatpush.bf16.msra.mxu0 %v385
      %405 = vmatpush.bf16.msra.mxu0 %v384
      %406 = vmatpush.bf16.msra.mxu0 %v383
      %407 = vmatmul.bf16.gmra.mxu0 %v319
      %v408 = vpop.f32.mrf.mxu0
      %v409 = vadd.f32 0.0, %v408
      %v410 = vpop.f32.mrf.mxu0
      %v411 = vadd.f32 0.0, %v410
      %412 = vmatmul.bf16.gmra.mxu0 %v320
      %v413 = vpop.f32.mrf.mxu0
      %v414 = vadd.f32 0.0, %v413
      %v415 = vpop.f32.mrf.mxu0
      %v416 = vadd.f32 0.0, %v415
      %417 = vmatmul.bf16.gmra.mxu0 %v321
      %v418 = vpop.f32.mrf.mxu0
      %v419 = vadd.f32 0.0, %v418
      %v420 = vpop.f32.mrf.mxu0
      %v421 = vadd.f32 0.0, %v420
      %422 = vmatmul.bf16.gmra.mxu0 %v322
      %v423 = vpop.f32.mrf.mxu0
      %v424 = vadd.f32 0.0, %v423
      %v425 = vpop.f32.mrf.mxu0
      %v426 = vadd.f32 0.0, %v425
      %427 = vmatmul.bf16.gmra.mxu0 %v323
      %v428 = vpop.f32.mrf.mxu0
      %v429 = vadd.f32 0.0, %v428
      %v430 = vpop.f32.mrf.mxu0
      %v431 = vadd.f32 0.0, %v430
      %432 = vmatmul.bf16.gmra.mxu0 %v324
      %v433 = vpop.f32.mrf.mxu0
      %v434 = vadd.f32 0.0, %v433
      %v435 = vpop.f32.mrf.mxu0
      %v436 = vadd.f32 0.0, %v435
      %437 = vmatmul.bf16.gmra.mxu0 %v325
      %v438 = vpop.f32.mrf.mxu0
      %v439 = vadd.f32 0.0, %v438
      %v440 = vpop.f32.mrf.mxu0
      %v441 = vadd.f32 0.0, %v440
      %442 = vmatmul.bf16.gmra.mxu0 %v326
      %v443 = vpop.f32.mrf.mxu0
      %v444 = vadd.f32 0.0, %v443
      %v445 = vpop.f32.mrf.mxu0
      %v446 = vadd.f32 0.0, %v445
      %447 = vmatmul.bf16.gmra.mxu0 %v327
      %v448 = vpop.f32.mrf.mxu0
      %v449 = vadd.f32 0.0, %v448
      %v450 = vpop.f32.mrf.mxu0
      %v451 = vadd.f32 0.0, %v450
      %452 = vmatmul.bf16.gmra.mxu0 %v328
      %v453 = vpop.f32.mrf.mxu0
      %v454 = vadd.f32 0.0, %v453
      %v455 = vpop.f32.mrf.mxu0
      %v456 = vadd.f32 0.0, %v455
      %457 = vmatmul.bf16.gmra.mxu0 %v329
      %v458 = vpop.f32.mrf.mxu0
      %v459 = vadd.f32 0.0, %v458
      %v460 = vpop.f32.mrf.mxu0
      %v461 = vadd.f32 0.0, %v460
      %462 = vmatmul.bf16.gmra.mxu0 %v330
      %v463 = vpop.f32.mrf.mxu0
      %v464 = vadd.f32 0.0, %v463
      %v465 = vpop.f32.mrf.mxu0
      %v466 = vadd.f32 0.0, %v465
      %467 = vmatmul.bf16.gmra.mxu0 %v331
      %v468 = vpop.f32.mrf.mxu0
      %v469 = vadd.f32 0.0, %v468
      %v470 = vpop.f32.mrf.mxu0
      %v471 = vadd.f32 0.0, %v470
      %472 = vmatmul.bf16.gmra.mxu0 %v332
      %v473 = vpop.f32.mrf.mxu0
      %v474 = vadd.f32 0.0, %v473
      %v475 = vpop.f32.mrf.mxu0
      %v476 = vadd.f32 0.0, %v475
      %477 = vmatmul.bf16.gmra.mxu0 %v333
      %v478 = vpop.f32.mrf.mxu0
      %v479 = vadd.f32 0.0, %v478
      %v480 = vpop.f32.mrf.mxu0
      %v481 = vadd.f32 0.0, %v480
      %482 = vmatmul.bf16.gmra.mxu0 %v334
      %v483 = vpop.f32.mrf.mxu0
      %v484 = vadd.f32 0.0, %v483
      %v485 = vpop.f32.mrf.mxu0
      %v486 = vadd.f32 0.0, %v485
      %487 = vdwg.mxu0
      %v488 = vadd.f32 %v409, %v411
      %v489 = vadd.f32 %v488, %v414
      %v490 = vadd.f32 %v489, %v416
      %v491 = vadd.f32 %v490, %v419
      %v492 = vadd.f32 %v491, %v421
      %v493 = vadd.f32 %v492, %v424
      %v494 = vadd.f32 %v493, %v426
      %v495 = vadd.f32 %v494, %v429
      %v496 = vadd.f32 %v495, %v431
      %v497 = vadd.f32 %v496, %v434
      %v498 = vadd.f32 %v497, %v436
      %v499 = vadd.f32 %v498, %v439
      %v500 = vadd.f32 %v499, %v441
      %v501 = vadd.f32 %v500, %v444
      %v502 = vadd.f32 %v501, %v446
      %v503 = vadd.f32 %v502, %v449
      %v504 = vadd.f32 %v503, %v451
      %v505 = vadd.f32 %v504, %v454
      %v506 = vadd.f32 %v505, %v456
      %v507 = vadd.f32 %v506, %v459
      %v508 = vadd.f32 %v507, %v461
      %v509 = vadd.f32 %v508, %v464
      %v510 = vadd.f32 %v509, %v466
      %v511 = vadd.f32 %v510, %v469
      %v512 = vadd.f32 %v511, %v471
      %v513 = vadd.f32 %v512, %v474
      %v514 = vadd.f32 %v513, %v476
      %v515 = vadd.f32 %v514, %v479
      %v516 = vadd.f32 %v515, %v481
      %v517 = vadd.f32 %v516, %v484
      %v518 = vadd.f32 %v517, %v486
      %v519 = vrot.slane %v518, 4
      %v520 = vadd.f32 %v518, %v519
      %v521 = vrot.slane %v520, 2
      %v522 = vadd.f32 %v520, %v521
      %v523 = vrot.slane %v522, 1
      %v524 = vadd.f32 %v522, %v523
      %525 = vst [vmem:[%s200] sm:$0x1] %v524
      %v526 = vmul.f32 %v409, %v409
      %v527 = vmul.f32 %v411, %v411
      %v528 = vmul.f32 %v414, %v414
      %v529 = vmul.f32 %v416, %v416
      %v530 = vmul.f32 %v419, %v419
      %v531 = vmul.f32 %v421, %v421
      %v532 = vmul.f32 %v424, %v424
      %v533 = vmul.f32 %v426, %v426
      %v534 = vmul.f32 %v429, %v429
      %v535 = vmul.f32 %v431, %v431
      %v536 = vmul.f32 %v434, %v434
      %v537 = vmul.f32 %v436, %v436
      %v538 = vmul.f32 %v439, %v439
      %v539 = vmul.f32 %v441, %v441
      %v540 = vmul.f32 %v444, %v444
      %v541 = vmul.f32 %v446, %v446
      %v542 = vmul.f32 %v449, %v449
      %v543 = vmul.f32 %v451, %v451
      %v544 = vmul.f32 %v454, %v454
      %v545 = vmul.f32 %v456, %v456
      %v546 = vmul.f32 %v459, %v459
      %v547 = vmul.f32 %v461, %v461
      %v548 = vmul.f32 %v464, %v464
      %v549 = vmul.f32 %v466, %v466
      %v550 = vmul.f32 %v469, %v469
      %v551 = vmul.f32 %v471, %v471
      %v552 = vmul.f32 %v474, %v474
      %v553 = vmul.f32 %v476, %v476
      %v554 = vmul.f32 %v479, %v479
      %v555 = vmul.f32 %v481, %v481
      %v556 = vmul.f32 %v484, %v484
      %v557 = vmul.f32 %v486, %v486
      %v558 = vadd.f32 %v526, %v527
      %v559 = vadd.f32 %v558, %v528
      %v560 = vadd.f32 %v559, %v529
      %v561 = vadd.f32 %v560, %v530
      %v562 = vadd.f32 %v561, %v531
      %v563 = vadd.f32 %v562, %v532
      %v564 = vadd.f32 %v563, %v533
      %v565 = vadd.f32 %v564, %v534
      %v566 = vadd.f32 %v565, %v535
      %v567 = vadd.f32 %v566, %v536
      %v568 = vadd.f32 %v567, %v537
      %v569 = vadd.f32 %v568, %v538
      %v570 = vadd.f32 %v569, %v539
      %v571 = vadd.f32 %v570, %v540
      %v572 = vadd.f32 %v571, %v541
      %v573 = vadd.f32 %v572, %v542
      %v574 = vadd.f32 %v573, %v543
      %v575 = vadd.f32 %v574, %v544
      %v576 = vadd.f32 %v575, %v545
      %v577 = vadd.f32 %v576, %v546
      %v578 = vadd.f32 %v577, %v547
      %v579 = vadd.f32 %v578, %v548
      %v580 = vadd.f32 %v579, %v549
      %v581 = vadd.f32 %v580, %v550
      %v582 = vadd.f32 %v581, %v551
      %v583 = vadd.f32 %v582, %v552
      %v584 = vadd.f32 %v583, %v553
      %v585 = vadd.f32 %v584, %v554
      %v586 = vadd.f32 %v585, %v555
      %v587 = vadd.f32 %v586, %v556
      %v588 = vadd.f32 %v587, %v557
      %v589 = vrot.slane %v588, 4
      %v590 = vadd.f32 %v588, %v589
      %v591 = vrot.slane %v590, 2
      %v592 = vadd.f32 %v590, %v591
      %v593 = vrot.slane %v592, 1
      %v594 = vadd.f32 %v592, %v593
      %595 = vst [vmem:[%s205] sm:$0x1] %v594
      %s596 = sadd.s32 %s19, %s20
      %p597 = scmp.lt.s32.totalorder %s596, 1
      %s598 = scalar_select %p597, %s596, 1
      %s599 = scalar_lea.vmem %s2, %s598
      %s600 = sadd.s32 %s19, %s20
      %p601 = scmp.lt.s32.totalorder %s600, 1
      %s602 = scalar_select %p601, %s600, 1
      %s603 = scalar_lea.vmem %s3, %s602
      // Predicated region
      $region29: #{conv_block_forward.2} parent=27 // pred_check
        %p604 = pneg %p96
      $region30: #{conv_block_forward.2} parent=27 // pred_check_branch
        %606 = sbr.rel (%p604) target = $region32
      $region31: #{conv_block_forward.2} parent=27 // pred_region
        %s607 = sadd.s32 %s19, %s20
      $region32: #{conv_block_forward.2} parent=27 // pred_fallthru
        _
      // Predicated region
      $region33: #{conv_block_forward.2} parent=27 // pred_check
        %p608 = pneg %p124
      $region34: #{conv_block_forward.2} parent=27 // pred_check_branch
        %610 = sbr.rel (%p608) target = $region36
      $region35: #{conv_block_forward.2} parent=27 // pred_region
        %s611 = sadd.s32 %s19, %s20
      $region36: #{conv_block_forward.2} parent=27 // pred_fallthru
        _
    $region28: #{conv_block_forward.2} parent=5 // pred_fallthru
      _
    %p612 = scmp.le.s32.totalorder 2, %s10
    // Predicated region
    $region37: #{conv_block_forward.2} parent=5 // pred_check
      %p613 = pneg %p612
    $region38: #{conv_block_forward.2} parent=5 // pred_check_branch
      %615 = sbr.rel (%p613) target = $region40
    $region39: #{conv_block_forward.2} parent=5 // pred_region
      %s616 = ssub.s32 %s10, 2
      // Predicated region
      $region41: #{conv_block_forward.2} parent=39 // pred_check
        %p617 = pneg %p102
      $region42: #{conv_block_forward.2} parent=39 // pred_check_branch
        %619 = sbr.rel (%p617) target = $region44
      $region43: #{conv_block_forward.2} parent=39 // pred_region
        %s620 = sadd.s32 %s21, %s22
        %p621 = scmp.lt.s32.totalorder %s620, 1
        %s622 = scalar_select %p621, %s620, 1
        %s623 = scalar_lea.vmem %s2, %s622
      $region44: #{conv_block_forward.2} parent=39 // pred_fallthru
        _
      // Predicated region
      $region45: #{conv_block_forward.2} parent=39 // pred_check
        %p624 = pneg %p130
      $region46: #{conv_block_forward.2} parent=39 // pred_check_branch
        %626 = sbr.rel (%p624) target = $region48
      $region47: #{conv_block_forward.2} parent=39 // pred_region
        %s627 = sadd.s32 %s21, %s22
        %p628 = scmp.lt.s32.totalorder %s627, 1
        %s629 = scalar_select %p628, %s627, 1
        %s630 = scalar_lea.vmem %s3, %s629
      $region48: #{conv_block_forward.2} parent=39 // pred_fallthru
        _
    $region40: #{conv_block_forward.2} parent=5 // pred_fallthru
      _
  $region6: #{conv_block_forward.2} parent=0 // loop_footer
    %s14 = sadd.s32 1, %s10
  $region7: #{conv_block_forward.2} parent=0 // loop_footer_branch
    %9 = sbr.rel target = $region3
  $region8: #{conv_block_forward.2} parent=0 // loop_exit
    _

// kernel: conv_block_forward.3
$region0: #{conv_block_forward.3}
  #allocation0 [shape = 'u32[]', space=smem, size = 0x4, offset = 0x4, fixed_abs, tag = 'smem constant byte address 0x4 - core index']
  #allocation1 [shape = 'u32[72,128]{1,0:T(1,128)}', space=vmem, size = 0x9000, scoped, tag = 'internal scratch']
  %s0 = inlined_call_operand.vmem [shape: bf16[512,128], index: 0, kind: input, shape index: {}]
  %s1 = inlined_call_operand.vmem [shape: bf16[128,128], index: 1, kind: input, shape index: {}]
  %s2 = inlined_call_operand.vmem [shape: f32[1,128], index: 2, kind: input, shape index: {}]
  %s3 = inlined_call_operand.vmem [shape: f32[1,128], index: 3, kind: input, shape index: {}]
  %s4 = inlined_call_operand.vmem [shape: f32[2,8,256], index: 4, kind: output, shape index: {}]
  %s5 = sld [smem:[#allocation0]]
  $region49: #{conv_block_forward.3} parent=0
    _
  %s7 = ssub.s32 1, %s5
  %s8 = scalar_select 0, %s7, %s5
  loop: start=0, step=1, limit=4
  $region2: #{conv_block_forward.3} parent=0 // loop_pre_header
    _
  $region3: #{conv_block_forward.3} parent=0 // loop_header
    %s10 = sphi 0, %s14
    %p11 = scmp.ge.s32.totalorder %s10, 4
    %s17 = sphi 0, %s29
    %s18 = sphi 0, %s25
    %s19 = sphi 0, %s17
    %s20 = sphi 0, %s18
    %s21 = sphi 0, %s19
    %s22 = sphi 0, %s20
    %s34 = sphi 0, %s36
    %s37 = sphi 0, %s34
    %s38 = sphi 0, %s37
    %s54 = sphi 0, %s38
    %s58 = sphi 0, %s58
    %s60 = sphi 0, %s58
    %s61 = sphi 0, %s60
    %s75 = sphi 0, %s61
    %s79 = sphi 0, %s79
    %s81 = sphi 0, %s79
    %s82 = sphi 0, %s81
    %s96 = sphi 0, %s82
    %s100 = sphi 0, %s100
    %s102 = sphi 0, %s100
    %s103 = sphi 0, %s102
    %s117 = sphi 0, %s103
    %s125 = sphi 0, %s127
    %s128 = sphi 0, %s125
    %s129 = sphi 0, %s128
    %s145 = sphi 0, %s129
  $region4: #{conv_block_forward.3} parent=0 // loop_header_branch
    %13 = sbr.rel (%p11) target = $region8
  $region5: #{conv_block_forward.3} parent=0 // loop_body
    %s15 = ssub.s32 %s10, 1
    %s16 = ssub.s32 %s10, 2
    %s23 = sadd.s32 1, %s18
    %p24 = scmp.ge.s32.totalorder %s23, 1
    %s25 = scalar_select %p24, 0, %s23
    %s26 = sadd.s32 1, %s17
    %s27 = scalar_select %p24, %s26, %s17
    %p28 = scmp.ge.s32.totalorder %s27, 2
    %s29 = scalar_select %p28, 0, %s27
    %s30 = sadd.s32 %s17, %s18
    %s31 = sadd.s32 %s29, %s25
    %s32 = ssub.s32 %s30, %s31
    %p33 = scmp.eq.s32.totalorder %s32, 0
    %s35 = sadd.s32 %s34, 1
    %s36 = scalar_select %p33, %s34, %s35
    %p39 = pneg %p33
    %p40 = scmp.eq.s32.totalorder %s10, 1
    %p41 = por %p39, %p40
    %p42 = scmp.ne.s32.totalorder %s34, %s37
    %p43 = scmp.eq.s32.totalorder %s10, 0
    %p44 = por %p42, %p43
    %p45 = scmp.ne.s32.totalorder %s34, %s37
    %p46 = scmp.eq.s32.totalorder %s15, 1
    %p47 = por %p45, %p46
    %p48 = scmp.ne.s32.totalorder %s37, %s38
    %p49 = scmp.eq.s32.totalorder %s15, 0
    %p50 = por %p48, %p49
    %p51 = scmp.ne.s32.totalorder %s37, %s38
    %p52 = scmp.eq.s32.totalorder %s16, 1
    %p53 = por %p51, %p52
    %p55 = scmp.ne.s32.totalorder %s38, %s54
    %p56 = scmp.eq.s32.totalorder %s16, 0
    %p57 = por %p55, %p56
    %s59 = sadd.s32 %s58, 1
    %p62 = scmp.eq.s32.totalorder %s10, 1
    %p63 = scmp.ne.s32.totalorder %s58, %s60
    %p64 = scmp.eq.s32.totalorder %s10, 0
    %p65 = por %p63, %p64
    %p66 = scmp.ne.s32.totalorder %s58, %s60
    %p67 = scmp.eq.s32.totalorder %s15, 1
    %p68 = por %p66, %p67
    %p69 = scmp.ne.s32.totalorder %s60, %s61
    %p70 = scmp.eq.s32.totalorder %s15, 0
    %p71 = por %p69, %p70
    %p72 = scmp.ne.s32.totalorder %s60, %s61
    %p73 = scmp.eq.s32.totalorder %s16, 1
    %p74 = por %p72, %p73
    %p76 = scmp.ne.s32.totalorder %s61, %s75
    %p77 = scmp.eq.s32.totalorder %s16, 0
    %p78 = por %p76, %p77
    %s80 = sadd.s32 %s79, 1
    %p83 = scmp.eq.s32.totalorder %s10, 1
    %p84 = scmp.ne.s32.totalorder %s79, %s81
    %p85 = scmp.eq.s32.totalorder %s10, 0
    %p86 = por %p84, %p85
    %p87 = scmp.ne.s32.totalorder %s79, %s81
    %p88 = scmp.eq.s32.totalorder %s15, 1
    %p89 = por %p87, %p88
    %p90 = scmp.ne.s32.totalorder %s81, %s82
    %p91 = scmp.eq.s32.totalorder %s15, 0
    %p92 = por %p90, %p91
    %p93 = scmp.ne.s32.totalorder %s81, %s82
    %p94 = scmp.eq.s32.totalorder %s16, 1
    %p95 = por %p93, %p94
    %p97 = scmp.ne.s32.totalorder %s82, %s96
    %p98 = scmp.eq.s32.totalorder %s16, 0
    %p99 = por %p97, %p98
    %s101 = sadd.s32 %s100, 1
    %p104 = scmp.eq.s32.totalorder %s10, 1
    %p105 = scmp.ne.s32.totalorder %s100, %s102
    %p106 = scmp.eq.s32.totalorder %s10, 0
    %p107 = por %p105, %p106
    %p108 = scmp.ne.s32.totalorder %s100, %s102
    %p109 = scmp.eq.s32.totalorder %s15, 1
    %p110 = por %p108, %p109
    %p111 = scmp.ne.s32.totalorder %s102, %s103
    %p112 = scmp.eq.s32.totalorder %s15, 0
    %p113 = por %p111, %p112
    %p114 = scmp.ne.s32.totalorder %s102, %s103
    %p115 = scmp.eq.s32.totalorder %s16, 1
    %p116 = por %p114, %p115
    %p118 = scmp.ne.s32.totalorder %s103, %s117
    %p119 = scmp.eq.s32.totalorder %s16, 0
    %p120 = por %p118, %p119
    %s121 = ssub.s32 %s17, %s29
    %s122 = ssub.s32 %s18, %s25
    %s123 = sor.u32 %s121, %s122
    %p124 = scmp.eq.s32.totalorder %s123, 0
    %s126 = sadd.s32 %s125, 1
    %s127 = scalar_select %p124, %s125, %s126
    %p130 = pneg %p124
    %p131 = scmp.eq.s32.totalorder %s10, 1
    %p132 = por %p130, %p131
    %p133 = scmp.ne.s32.totalorder %s125, %s128
    %p134 = scmp.eq.s32.totalorder %s10, 0
    %p135 = por %p133, %p134
    %p136 = scmp.ne.s32.totalorder %s125, %s128
    %p137 = scmp.eq.s32.totalorder %s15, 1
    %p138 = por %p136, %p137
    %p139 = scmp.ne.s32.totalorder %s128, %s129
    %p140 = scmp.eq.s32.totalorder %s15, 0
    %p141 = por %p139, %p140
    %p142 = scmp.ne.s32.totalorder %s128, %s129
    %p143 = scmp.eq.s32.totalorder %s16, 1
    %p144 = por %p142, %p143
    %p146 = scmp.ne.s32.totalorder %s129, %s145
    %p147 = scmp.eq.s32.totalorder %s16, 0
    %p148 = por %p146, %p147
    %p149 = scmp.le.s32.totalorder 1, %s10
    %p150 = scmp.lt.s32.totalorder %s10, 3
    %p151 = pnand %p149, %p150
    %p152 = pneg %p151
    // Predicated region
    $region9: #{conv_block_forward.3} parent=5 // pred_check
      _
    $region10: #{conv_block_forward.3} parent=5 // pred_check_branch
      %154 = sbr.rel (%p151) target = $region12
    $region11: #{conv_block_forward.3} parent=5 // pred_region
      %s155 = ssub.s32 %s10, 1
      // Predicated region
      $region13: #{conv_block_forward.3} parent=11 // pred_check
        %p156 = pneg %p71
      $region14: #{conv_block_forward.3} parent=11 // pred_check_branch
        %158 = sbr.rel (%p156) target = $region16
      $region15: #{conv_block_forward.3} parent=11 // pred_region
        _
      $region16: #{conv_block_forward.3} parent=11 // pred_fallthru
        _
      // Predicated region
      $region17: #{conv_block_forward.3} parent=11 // pred_check
        %p159 = pneg %p92
      $region18: #{conv_block_forward.3} parent=11 // pred_check_branch
        %161 = sbr.rel (%p159) target = $region20
      $region19: #{conv_block_forward.3} parent=11 // pred_region
        _
      $region20: #{conv_block_forward.3} parent=11 // pred_fallthru
        _
      // Predicated region
      $region21: #{conv_block_forward.3} parent=11 // pred_check
        %p162 = pneg %p113
      $region22: #{conv_block_forward.3} parent=11 // pred_check_branch
        %164 = sbr.rel (%p162) target = $region24
      $region23: #{conv_block_forward.3} parent=11 // pred_region
        _
      $region24: #{conv_block_forward.3} parent=11 // pred_fallthru
        _
    $region12: #{conv_block_forward.3} parent=5 // pred_fallthru
      _
    %p165 = scmp.lt.s32.totalorder %s10, 2
    // Predicated region
    $region25: #{conv_block_forward.3} parent=5 // pred_check
      %p166 = pneg %p165
    $region26: #{conv_block_forward.3} parent=5 // pred_check_branch
      %168 = sbr.rel (%p166) target = $region28
    $region27: #{conv_block_forward.3} parent=5 // pred_region
      // Predicated region
      $region29: #{conv_block_forward.3} parent=27 // pred_check
        %p169 = pneg %p44
      $region30: #{conv_block_forward.3} parent=27 // pred_check_branch
        %171 = sbr.rel (%p169) target = $region32
      $region31: #{conv_block_forward.3} parent=27 // pred_region
        %s172 = sadd.s32 %s17, %s18
        %s173 = smul.u32 32, %s172
        %p174 = scmp.lt.s32.totalorder %s173, 63
        %s175 = scalar_select %p174, %s173, 63
        %s176 = smul.addr %s175, 4
        %s177 = scalar_lea.vmem %s0, %s176
        %s178 = sadd.s32 %s17, %s18
        %s179 = smul.u32 32, %s178
      $region32: #{conv_block_forward.3} parent=27 // pred_fallthru
        _
    $region28: #{conv_block_forward.3} parent=5 // pred_fallthru
      _
    %p180 = scmp.le.s32.totalorder 1, %s10
    %p181 = scmp.lt.s32.totalorder %s10, 3
    %p182 = pnand %p180, %p181
    %p183 = pneg %p182
    // Predicated region
    $region33: #{conv_block_forward.3} parent=5 // pred_check
      _
    $region34: #{conv_block_forward.3} parent=5 // pred_check_branch
      %185 = sbr.rel (%p182) target = $region36
    $region35: #{conv_block_forward.3} parent=5 // pred_region
      %s186 = ssub.s32 %s10, 1
      %s187 = sadd.s32 %s19, %s20
      %s188 = smul.u32 32, %s187
      %p189 = scmp.lt.s32.totalorder %s188, 63
      %s190 = scalar_select %p189, %s188, 63
      %s191 = smul.addr %s190, 4
      %s192 = scalar_lea.vmem %s0, %s191
      %p193 = pneg %p50
      %p194 = pneg %p47
      %p195 = pneg %p71
      %p196 = pneg %p68
      %p197 = pneg %p92
      %p198 = pneg %p89
      %p199 = pneg %p113
      %p200 = pneg %p110
      %p201 = pneg %p141
      %p202 = pneg %p138
      %s203 = smul.u32 2, %s20
      %p204 = scmp.lt.s32.totalorder %s19, 1
      %s205 = scalar_select %p204, %s19, 1
      %p206 = scmp.lt.s32.totalorder %s203, 1
      %s207 = scalar_select %p206, %s203, 1
      %s208 = smul.addr %s205, 2
      %s209 = sadd.s32 %s207, %s208
      %s210 = smul.addr %s209, 8
      %s211 = scalar_lea.vmem %s4, %s210
      %s212 = sadd.s32 %s19, %s20
      %s213 = smul.u32 32, %s212
      %p214 = scmp.lt.s32.totalorder %s213, 63
      %s215 = scalar_select %p214, %s213, 63
      %s216 = smul.addr %s215, 4
      %s217 = scalar_lea.vmem %s0, %s216
      %s218 = sadd.s32 %s19, %s20
      %s219 = smul.u32 32, %s218
      %s220 = smul.u32 2, %s20
      %p221 = scmp.lt.s32.totalorder %s19, 1
      %s222 = scalar_select %p221, %s19, 1
      %p223 = scmp.lt.s32.totalorder %s220, 1
      %s224 = scalar_select %p223, %s220, 1
      %s225 = smul.addr %s222, 2
      %s226 = sadd.s32 %s224, %s225
      %s227 = smul.addr %s226, 8
      %s228 = scalar_lea.vmem %s4, %s227
      %s229 = smul.u32 2, %s20
      %v230 = vld [vmem:[%s217] sm:$0xf]
      %v231 = vld [vmem:[%s217 + $0x4] sm:$0xf]
      %v232 = vld [vmem:[%s217 + $0x8] sm:$0xf]
      %v233 = vld [vmem:[%s217 + $0xc] sm:$0xf]
      %v234 = vld [vmem:[%s217 + $0x10] sm:$0xf]
      %v235 = vld [vmem:[%s217 + $0x14] sm:$0xf]
      %v236 = vld [vmem:[%s217 + $0x18] sm:$0xf]
      %v237 = vld [vmem:[%s217 + $0x1c] sm:$0xf]
      %v238 = vld [vmem:[%s217 + $0x20] sm:$0xf]
      %v239 = vld [vmem:[%s217 + $0x24] sm:$0xf]
      %v240 = vld [vmem:[%s217 + $0x28] sm:$0xf]
      %v241 = vld [vmem:[%s217 + $0x2c] sm:$0xf]
      %v242 = vld [vmem:[%s217 + $0x30] sm:$0xf]
      %v243 = vld [vmem:[%s217 + $0x34] sm:$0xf]
      %v244 = vld [vmem:[%s217 + $0x38] sm:$0xf]
      %v245 = vld [vmem:[%s217 + $0x3c] sm:$0xf]
      %v246 = vld [vmem:[%s217 + $0x40] sm:$0xf]
      %v247 = vld [vmem:[%s217 + $0x44] sm:$0xf]
      %v248 = vld [vmem:[%s217 + $0x48] sm:$0xf]
      %v249 = vld [vmem:[%s217 + $0x4c] sm:$0xf]
      %v250 = vld [vmem:[%s217 + $0x50] sm:$0xf]
      %v251 = vld [vmem:[%s217 + $0x54] sm:$0xf]
      %v252 = vld [vmem:[%s217 + $0x58] sm:$0xf]
      %v253 = vld [vmem:[%s217 + $0x5c] sm:$0xf]
      %v254 = vld [vmem:[%s217 + $0x60] sm:$0xf]
      %v255 = vld [vmem:[%s217 + $0x64] sm:$0xf]
      %v256 = vld [vmem:[%s217 + $0x68] sm:$0xf]
      %v257 = vld [vmem:[%s217 + $0x6c] sm:$0xf]
      %v258 = vld [vmem:[%s217 + $0x70] sm:$0xf]
      %v259 = vld [vmem:[%s217 + $0x74] sm:$0xf]
      %v260 = vld [vmem:[%s217 + $0x78] sm:$0xf]
      %v261 = vld [vmem:[%s217 + $0x7c] sm:$0xf]
      %v262 = vld [vmem:[%s1] sm:$0xf]
      %v263 = vld [vmem:[%s1 + $0x4] sm:$0xf]
      %v264 = vld [vmem:[%s1 + $0x8] sm:$0xf]
      %v265 = vld [vmem:[%s1 + $0xc] sm:$0xf]
      %v266 = vld [vmem:[%s1 + $0x10] sm:$0xf]
      %v267 = vld [vmem:[%s1 + $0x14] sm:$0xf]
      %v268 = vld [vmem:[%s1 + $0x18] sm:$0xf]
      %v269 = vld [vmem:[%s1 + $0x1c] sm:$0xf]
      %v270 = vld [vmem:[%s1 + $0x20] sm:$0xf]
      %v271 = vld [vmem:[%s1 + $0x24] sm:$0xf]
      %v272 = vld [vmem:[%s1 + $0x28] sm:$0xf]
      %v273 = vld [vmem:[%s1 + $0x2c] sm:$0xf]
      %v274 = vld [vmem:[%s1 + $0x30] sm:$0xf]
      %v275 = vld [vmem:[%s1 + $0x34] sm:$0xf]
      %v276 = vld [vmem:[%s1 + $0x38] sm:$0xf]
      %v277 = vld [vmem:[%s1 + $0x3c] sm:$0xf]
      %v310 = vunpack.c.l.b16 %v230
      %v311 = vunpack.c.l.b16 %v231
      %v312 = vunpack.c.l.b16 %v232
      %v313 = vunpack.c.l.b16 %v233
      %v314 = vunpack.c.l.b16 %v234
      %v315 = vunpack.c.l.b16 %v235
      %v316 = vunpack.c.l.b16 %v236
      %v317 = vunpack.c.l.b16 %v237
      %v318 = vunpack.c.l.b16 %v238
      %v319 = vunpack.c.l.b16 %v239
      %v320 = vunpack.c.l.b16 %v240
      %v321 = vunpack.c.l.b16 %v241
      %v322 = vunpack.c.l.b16 %v242
      %v323 = vunpack.c.l.b16 %v243
      %v324 = vunpack.c.l.b16 %v244
      %v325 = vunpack.c.l.b16 %v245
      %v326 = vunpack.c.l.b16 %v246
      %v327 = vunpack.c.l.b16 %v247
      %v328 = vunpack.c.l.b16 %v248
      %v329 = vunpack.c.l.b16 %v249
      %v330 = vunpack.c.l.b16 %v250
      %v331 = vunpack.c.l.b16 %v251
      %v332 = vunpack.c.l.b16 %v252
      %v333 = vunpack.c.l.b16 %v253
      %v334 = vunpack.c.l.b16 %v254
      %v335 = vunpack.c.l.b16 %v255
      %v336 = vunpack.c.l.b16 %v256
      %v337 = vunpack.c.l.b16 %v257
      %v338 = vunpack.c.l.b16 %v258
      %v339 = vunpack.c.l.b16 %v259
      %v340 = vunpack.c.l.b16 %v260
      %v341 = vunpack.c.l.b16 %v261
      %v342 = vpack.c.b16 %v311, %v310
      %v343 = vpack.c.b16 %v313, %v312
      %v344 = vpack.c.b16 %v315, %v314
      %v345 = vpack.c.b16 %v317, %v316
      %v346 = vpack.c.b16 %v319, %v318
      %v347 = vpack.c.b16 %v321, %v320
      %v348 = vpack.c.b16 %v323, %v322
      %v349 = vpack.c.b16 %v325, %v324
      %v350 = vpack.c.b16 %v327, %v326
      %v351 = vpack.c.b16 %v329, %v328
      %v352 = vpack.c.b16 %v331, %v330
      %v353 = vpack.c.b16 %v333, %v332
      %v354 = vpack.c.b16 %v335, %v334
      %v355 = vpack.c.b16 %v337, %v336
      %v356 = vpack.c.b16 %v339, %v338
      %v357 = vpack.c.b16 %v341, %v340
      %v390 = vunpack.c.l.b16 %v262
      %v391 = vunpack.c.l.b16 %v263
      %v392 = vunpack.c.l.b16 %v264
      %v393 = vunpack.c.l.b16 %v265
      %v394 = vunpack.c.l.b16 %v266
      %v395 = vunpack.c.l.b16 %v267
      %v396 = vunpack.c.l.b16 %v268
      %v397 = vunpack.c.l.b16 %v269
      %v398 = vunpack.c.l.b16 %v270
      %v399 = vunpack.c.l.b16 %v271
      %v400 = vunpack.c.l.b16 %v272
      %v401 = vunpack.c.l.b16 %v273
      %v402 = vunpack.c.l.b16 %v274
      %v403 = vunpack.c.l.b16 %v275
      %v404 = vunpack.c.l.b16 %v276
      %v405 = vunpack.c.l.b16 %v277
      %v406 = vpack.c.b16 %v391, %v390
      %v407 = vpack.c.b16 %v393, %v392
      %v408 = vpack.c.b16 %v395, %v394
      %v409 = vpack.c.b16 %v397, %v396
      %v410 = vpack.c.b16 %v399, %v398
      %v411 = vpack.c.b16 %v401, %v400
      %v412 = vpack.c.b16 %v403, %v402
      %v413 = vpack.c.b16 %v405, %v404
      %422 = vmatpush.bf16.msra.mxu0 %v413
      %423 = vmatpush.bf16.msra.mxu0 %v412
      %424 = vmatpush.bf16.msra.mxu0 %v411
      %425 = vmatpush.bf16.msra.mxu0 %v410
      %426 = vmatpush.bf16.msra.mxu0 %v409
      %427 = vmatpush.bf16.msra.mxu0 %v408
      %428 = vmatpush.bf16.msra.mxu0 %v407
      %429 = vmatpush.bf16.msra.mxu0 %v406
      %430 = vmatmul.bf16.gmra.mxu0 %v342
      %v431 = vpop.f32.mrf.mxu0
      %v432 = vadd.f32 0.0, %v431
      %v433 = vpop.f32.mrf.mxu0
      %v434 = vadd.f32 0.0, %v433
      %435 = vmatmul.bf16.gmra.mxu0 %v343
      %v436 = vpop.f32.mrf.mxu0
      %v437 = vadd.f32 0.0, %v436
      %v438 = vpop.f32.mrf.mxu0
      %v439 = vadd.f32 0.0, %v438
      %440 = vmatmul.bf16.gmra.mxu0 %v344
      %v441 = vpop.f32.mrf.mxu0
      %v442 = vadd.f32 0.0, %v441
      %v443 = vpop.f32.mrf.mxu0
      %v444 = vadd.f32 0.0, %v443
      %445 = vmatmul.bf16.gmra.mxu0 %v345
      %v446 = vpop.f32.mrf.mxu0
      %v447 = vadd.f32 0.0, %v446
      %v448 = vpop.f32.mrf.mxu0
      %v449 = vadd.f32 0.0, %v448
      %450 = vmatmul.bf16.gmra.mxu0 %v346
      %v451 = vpop.f32.mrf.mxu0
      %v452 = vadd.f32 0.0, %v451
      %v453 = vpop.f32.mrf.mxu0
      %v454 = vadd.f32 0.0, %v453
      %455 = vmatmul.bf16.gmra.mxu0 %v347
      %v456 = vpop.f32.mrf.mxu0
      %v457 = vadd.f32 0.0, %v456
      %v458 = vpop.f32.mrf.mxu0
      %v459 = vadd.f32 0.0, %v458
      %460 = vmatmul.bf16.gmra.mxu0 %v348
      %v461 = vpop.f32.mrf.mxu0
      %v462 = vadd.f32 0.0, %v461
      %v463 = vpop.f32.mrf.mxu0
      %v464 = vadd.f32 0.0, %v463
      %465 = vmatmul.bf16.gmra.mxu0 %v349
      %v466 = vpop.f32.mrf.mxu0
      %v467 = vadd.f32 0.0, %v466
      %v468 = vpop.f32.mrf.mxu0
      %v469 = vadd.f32 0.0, %v468
      %470 = vmatmul.bf16.gmra.mxu0 %v350
      %v471 = vpop.f32.mrf.mxu0
      %v472 = vadd.f32 0.0, %v471
      %v473 = vpop.f32.mrf.mxu0
      %v474 = vadd.f32 0.0, %v473
      %475 = vmatmul.bf16.gmra.mxu0 %v351
      %v476 = vpop.f32.mrf.mxu0
      %v477 = vadd.f32 0.0, %v476
      %v478 = vpop.f32.mrf.mxu0
      %v479 = vadd.f32 0.0, %v478
      %480 = vmatmul.bf16.gmra.mxu0 %v352
      %v481 = vpop.f32.mrf.mxu0
      %v482 = vadd.f32 0.0, %v481
      %v483 = vpop.f32.mrf.mxu0
      %v484 = vadd.f32 0.0, %v483
      %485 = vmatmul.bf16.gmra.mxu0 %v353
      %v486 = vpop.f32.mrf.mxu0
      %v487 = vadd.f32 0.0, %v486
      %v488 = vpop.f32.mrf.mxu0
      %v489 = vadd.f32 0.0, %v488
      %490 = vmatmul.bf16.gmra.mxu0 %v354
      %v491 = vpop.f32.mrf.mxu0
      %v492 = vadd.f32 0.0, %v491
      %v493 = vpop.f32.mrf.mxu0
      %v494 = vadd.f32 0.0, %v493
      %495 = vmatmul.bf16.gmra.mxu0 %v355
      %v496 = vpop.f32.mrf.mxu0
      %v497 = vadd.f32 0.0, %v496
      %v498 = vpop.f32.mrf.mxu0
      %v499 = vadd.f32 0.0, %v498
      %500 = vmatmul.bf16.gmra.mxu0 %v356
      %v501 = vpop.f32.mrf.mxu0
      %v502 = vadd.f32 0.0, %v501
      %v503 = vpop.f32.mrf.mxu0
      %v504 = vadd.f32 0.0, %v503
      %505 = vmatmul.bf16.gmra.mxu0 %v357
      %v506 = vpop.f32.mrf.mxu0
      %v507 = vadd.f32 0.0, %v506
      %v508 = vpop.f32.mrf.mxu0
      %v509 = vadd.f32 0.0, %v508
      %510 = vdwg.mxu0
      %v511 = vld [vmem:[%s2] sm:$0x1]
      %v513 = vperm.slane %v511, 0
      %v515 = vmul.f32 %v432, %v513
      %v516 = vmul.f32 %v434, %v513
      %v517 = vmul.f32 %v437, %v513
      %v518 = vmul.f32 %v439, %v513
      %v519 = vmul.f32 %v442, %v513
      %v520 = vmul.f32 %v444, %v513
      %v521 = vmul.f32 %v447, %v513
      %v522 = vmul.f32 %v449, %v513
      %v523 = vmul.f32 %v452, %v513
      %v524 = vmul.f32 %v454, %v513
      %v525 = vmul.f32 %v457, %v513
      %v526 = vmul.f32 %v459, %v513
      %v527 = vmul.f32 %v462, %v513
      %v528 = vmul.f32 %v464, %v513
      %v529 = vmul.f32 %v467, %v513
      %v530 = vmul.f32 %v469, %v513
      %v531 = vmul.f32 %v472, %v513
      %v532 = vmul.f32 %v474, %v513
      %v533 = vmul.f32 %v477, %v513
      %v534 = vmul.f32 %v479, %v513
      %v535 = vmul.f32 %v482, %v513
      %v536 = vmul.f32 %v484, %v513
      %v537 = vmul.f32 %v487, %v513
      %v538 = vmul.f32 %v489, %v513
      %v539 = vmul.f32 %v492, %v513
      %v540 = vmul.f32 %v494, %v513
      %v541 = vmul.f32 %v497, %v513
      %v542 = vmul.f32 %v499, %v513
      %v543 = vmul.f32 %v502, %v513
      %v544 = vmul.f32 %v504, %v513
      %v545 = vmul.f32 %v507, %v513
      %v546 = vmul.f32 %v509, %v513
      %v547 = vld [vmem:[%s3] sm:$0x1]
      %v549 = vperm.slane %v547, 0
      %v551 = vadd.f32 %v515, %v549
      %v552 = vadd.f32 %v516, %v549
      %v553 = vadd.f32 %v517, %v549
      %v554 = vadd.f32 %v518, %v549
      %v555 = vadd.f32 %v519, %v549
      %v556 = vadd.f32 %v520, %v549
      %v557 = vadd.f32 %v521, %v549
      %v558 = vadd.f32 %v522, %v549
      %v559 = vadd.f32 %v523, %v549
      %v560 = vadd.f32 %v524, %v549
      %v561 = vadd.f32 %v525, %v549
      %v562 = vadd.f32 %v526, %v549
      %v563 = vadd.f32 %v527, %v549
      %v564 = vadd.f32 %v528, %v549
      %v565 = vadd.f32 %v529, %v549
      %v566 = vadd.f32 %v530, %v549
      %v567 = vadd.f32 %v531, %v549
      %v568 = vadd.f32 %v532, %v549
      %v569 = vadd.f32 %v533, %v549
      %v570 = vadd.f32 %v534, %v549
      %v571 = vadd.f32 %v535, %v549
      %v572 = vadd.f32 %v536, %v549
      %v573 = vadd.f32 %v537, %v549
      %v574 = vadd.f32 %v538, %v549
      %v575 = vadd.f32 %v539, %v549
      %v576 = vadd.f32 %v540, %v549
      %v577 = vadd.f32 %v541, %v549
      %v578 = vadd.f32 %v542, %v549
      %v579 = vadd.f32 %v543, %v549
      %v580 = vadd.f32 %v544, %v549
      %v581 = vadd.f32 %v545, %v549
      %v582 = vadd.f32 %v546, %v549
      %v583 = vmax.f32 %v551, 0.0
      %v584 = vmax.f32 %v552, 0.0
      %v585 = vmax.f32 %v553, 0.0
      %v586 = vmax.f32 %v554, 0.0
      %v587 = vmax.f32 %v555, 0.0
      %v588 = vmax.f32 %v556, 0.0
      %v589 = vmax.f32 %v557, 0.0
      %v590 = vmax.f32 %v558, 0.0
      %v591 = vmax.f32 %v559, 0.0
      %v592 = vmax.f32 %v560, 0.0
      %v593 = vmax.f32 %v561, 0.0
      %v594 = vmax.f32 %v562, 0.0
      %v595 = vmax.f32 %v563, 0.0
      %v596 = vmax.f32 %v564, 0.0
      %v597 = vmax.f32 %v565, 0.0
      %v598 = vmax.f32 %v566, 0.0
      %v599 = vmax.f32 %v567, 0.0
      %v600 = vmax.f32 %v568, 0.0
      %v601 = vmax.f32 %v569, 0.0
      %v602 = vmax.f32 %v570, 0.0
      %v603 = vmax.f32 %v571, 0.0
      %v604 = vmax.f32 %v572, 0.0
      %v605 = vmax.f32 %v573, 0.0
      %v606 = vmax.f32 %v574, 0.0
      %v607 = vmax.f32 %v575, 0.0
      %v608 = vmax.f32 %v576, 0.0
      %v609 = vmax.f32 %v577, 0.0
      %v610 = vmax.f32 %v578, 0.0
      %v611 = vmax.f32 %v579, 0.0
      %v612 = vmax.f32 %v580, 0.0
      %v613 = vmax.f32 %v581, 0.0
      %v614 = vmax.f32 %v582, 0.0
      %615 = vxpose.xlu0.b32.start [1/16] %v583, 128
      %616 = vxpose.xlu0.b32.cont [2/16] %v584, 128
      %617 = vxpose.xlu0.b32.cont [3/16] %v585, 128
      %618 = vxpose.xlu0.b32.cont [4/16] %v586, 128
      %619 = vxpose.xlu0.b32.cont [5/16] %v587, 128
      %620 = vxpose.xlu0.b32.cont [6/16] %v588, 128
      %621 = vxpose.xlu0.b32.cont [7/16] %v589, 128
      %622 = vxpose.xlu0.b32.cont [8/16] %v590, 128
      %623 = vxpose.xlu0.b32.cont [9/16] %v591, 128
      %624 = vxpose.xlu0.b32.cont [10/16] %v592, 128
      %625 = vxpose.xlu0.b32.cont [11/16] %v593, 128
      %626 = vxpose.xlu0.b32.cont [12/16] %v594, 128
      %627 = vxpose.xlu0.b32.cont [13/16] %v595, 128
      %628 = vxpose.xlu0.b32.cont [14/16] %v596, 128
      %629 = vxpose.xlu0.b32.cont [15/16] %v597, 128
      %630 = vxpose.xlu0.b32.end [16/16] %v598, 128
      %v631 = vpop.trf.xlu0
      %v632 = vpop.trf.xlu0
      %v633 = vpop.trf.xlu0
      %v634 = vpop.trf.xlu0
      %v635 = vpop.trf.xlu0
      %v636 = vpop.trf.xlu0
      %v637 = vpop.trf.xlu0
      %v638 = vpop.trf.xlu0
      %v639 = vpop.trf.xlu0
      %v640 = vpop.trf.xlu0
      %v641 = vpop.trf.xlu0
      %v642 = vpop.trf.xlu0
      %v643 = vpop.trf.xlu0
      %v644 = vpop.trf.xlu0
      %v645 = vpop.trf.xlu0
      %v646 = vpop.trf.xlu0
      %647 = vxpose.xlu0.b32.start [1/16] %v599, 128
      %648 = vxpose.xlu0.b32.cont [2/16] %v600, 128
      %649 = vxpose.xlu0.b32.cont [3/16] %v601, 128
      %650 = vxpose.xlu0.b32.cont [4/16] %v602, 128
      %651 = vxpose.xlu0.b32.cont [5/16] %v603, 128
      %652 = vxpose.xlu0.b32.cont [6/16] %v604, 128
      %653 = vxpose.xlu0.b32.cont [7/16] %v605, 128
      %654 = vxpose.xlu0.b32.cont [8/16] %v606, 128
      %655 = vxpose.xlu0.b32.cont [9/16] %v607, 128
      %656 = vxpose.xlu0.b32.cont [10/16] %v608, 128
      %657 = vxpose.xlu0.b32.cont [11/16] %v609, 128
      %658 = vxpose.xlu0.b32.cont [12/16] %v610, 128
      %659 = vxpose.xlu0.b32.cont [13/16] %v611, 128
      %660 = vxpose.xlu0.b32.cont [14/16] %v612, 128
      %661 = vxpose.xlu0.b32.cont [15/16] %v613, 128
      %662 = vxpose.xlu0.b32.end [16/16] %v614, 128
      %v663 = vpop.trf.xlu0
      %v664 = vpop.trf.xlu0
      %v665 = vpop.trf.xlu0
      %v666 = vpop.trf.xlu0
      %v667 = vpop.trf.xlu0
      %v668 = vpop.trf.xlu0
      %v669 = vpop.trf.xlu0
      %v670 = vpop.trf.xlu0
      %v671 = vpop.trf.xlu0
      %v672 = vpop.trf.xlu0
      %v673 = vpop.trf.xlu0
      %v674 = vpop.trf.xlu0
      %v675 = vpop.trf.xlu0
      %v676 = vpop.trf.xlu0
      %v677 = vpop.trf.xlu0
      %v678 = vpop.trf.xlu0
      %679 = vst [vmem:[%s228] sm:$0xff] %v631
      %680 = vst [vmem:[%s228 + $0x8] sm:$0xff] %v663
      %s681 = smul.u32 2, %s20
      %p682 = scmp.lt.s32.totalorder %s19, 1
      %s683 = scalar_select %p682, %s19, 1
      %p684 = scmp.lt.s32.totalorder %s681, 1
      %s685 = scalar_select %p684, %s681, 1
      %s686 = smul.addr %s683, 2
      %s687 = sadd.s32 %s685, %s686
      %s688 = smul.addr %s687, 8
      %s689 = scalar_lea.vmem %s4, %s688
      // Predicated region
      $region37: #{conv_block_forward.3} parent=35 // pred_check
        %p690 = pneg %p138
      $region38: #{conv_block_forward.3} parent=35 // pred_check_branch
        %692 = sbr.rel (%p690) target = $region40
      $region39: #{conv_block_forward.3} parent=35 // pred_region
        %s693 = smul.u32 2, %s20
      $region40: #{conv_block_forward.3} parent=35 // pred_fallthru
        _
    $region36: #{conv_block_forward.3} parent=5 // pred_fallthru
      _
    %p694 = scmp.le.s32.totalorder 2, %s10
    // Predicated region
    $region41: #{conv_block_forward.3} parent=5 // pred_check
      %p695 = pneg %p694
    $region42: #{conv_block_forward.3} parent=5 // pred_check_branch
      %697 = sbr.rel (%p695) target = $region44
    $region43: #{conv_block_forward.3} parent=5 // pred_region
      %s698 = ssub.s32 %s10, 2
      // Predicated region
      $region45: #{conv_block_forward.3} parent=43 // pred_check
        %p699 = pneg %p144
      $region46: #{conv_block_forward.3} parent=43 // pred_check_branch
        %701 = sbr.rel (%p699) target = $region48
      $region47: #{conv_block_forward.3} parent=43 // pred_region
        %s702 = smul.u32 2, %s22
        %p703 = scmp.lt.s32.totalorder %s21, 1
        %s704 = scalar_select %p703, %s21, 1
        %p705 = scmp.lt.s32.totalorder %s702, 1
        %s706 = scalar_select %p705, %s702, 1
        %s707 = smul.addr %s704, 2
        %s708 = sadd.s32 %s706, %s707
        %s709 = smul.addr %s708, 8
        %s710 = scalar_lea.vmem %s4, %s709
      $region48: #{conv_block_forward.3} parent=43 // pred_fallthru
        _
    $region44: #{conv_block_forward.3} parent=5 // pred_fallthru
      _
  $region6: #{conv_block_forward.3} parent=0 // loop_footer
    %s14 = sadd.s32 1, %s10
  $region7: #{conv_block_forward.3} parent=0 // loop_footer_branch
    %9 = sbr.rel target = $region3
  $region8: #{conv_block_forward.3} parent=0 // loop_exit
    _

</llo_original>
